<compile_context>
chip_gen: v5e
topology: v5e:2x2
jax: 0.10.0
libtpu: 0.0.40
codegen_flags: <defaults>
</compile_context>

<pallas_src>
import numpy as np
import jax
import jax.numpy as jnp
from jax import lax
from jax.experimental import pallas as pl
from jax.experimental.pallas import tpu as pltpu

# --- scene / shading constants (same as the PyTorch module) ---------------
BG = (0.572, 0.772, 0.921)            # background_color
LIGHT = (1.3, 0.3, 0.9)               # light_color
SCATTERING = 0.1
ABSORPTION = 0.1
DENSITY = 6.0
BASE_STEP = 0.2
RAY_ORIGIN = (0.0, 0.0, 3.0)

# folded constants
_EXT_NEG = -(SCATTERING + ABSORPTION + 0.4)      # -0.6 : per-step extinction exponent
_LIGHT_K = -DENSITY * (SCATTERING + ABSORPTION)  # -1.2 : light-ray attenuation exponent
_SD = SCATTERING * DENSITY                       #  0.6 : scatter*density

LANES = 128
CHUNK_ROWS = 8        # march vector width: (8,128) f32 == exactly one vreg per value
MAX_TILE_ROWS = 64    # 64*128 = 8192 pixels per grid step (amortizes ~0.35us/step overhead)


def _cdiv(a, b):
    return -(-a // b)


def _round_up(a, b):
    return _cdiv(a, b) * b


def _make_kernel(num_chunks):
    """Kernel over a (3, num_chunks*8, 128) block; marches 8-row chunks."""

    def kernel(scene_ref, dirs_ref, out_ref):
        # scene_ref: SMEM (4,) = [cx, cy, cz, radius]
        cx = scene_ref[0]
        cy = scene_ref[1]
        cz = scene_ref[2]
        rad = scene_ref[3]

        ox, oy, oz = RAY_ORIGIN
        ocx = ox - cx
        ocy = oy - cy
        ocz = oz - cz
        rad2 = rad * rad
        c = ocx * ocx + ocy * ocy + ocz * ocz - rad2   # scalar, shared by all rays

        dx_ref = dirs_ref.at[0]
        dy_ref = dirs_ref.at[1]
        dz_ref = dirs_ref.at[2]
        or_ref = out_ref.at[0]
        og_ref = out_ref.at[1]
        ob_ref = out_ref.at[2]

        @pl.loop(0, num_chunks)
        def _chunk(ci):
            r0 = pl.multiple_of(ci * CHUNK_ROWS, CHUNK_ROWS)
            rows = pl.ds(r0, CHUNK_ROWS)
            dx = dx_ref[rows, :]          # (8,128)
            dy = dy_ref[rows, :]
            dz = dz_ref[rows, :]

            # --- primary ray / sphere intersection (vectorized solve_quadratic) ---
            a = dx * dx + dy * dy + dz * dz
            b = 2.0 * (dx * ocx + dy * ocy + dz * ocz)
            disc = b * b - 4.0 * a * c
            sd = jnp.sqrt(jnp.maximum(disc, 0.0))
            inv2a = 1.0 / (2.0 * a)
            t0 = (-b - sd) * inv2a
            t1 = (-b + sd) * inv2a
            hit = (disc >= 0.0) & (t1 >= 0.0)
            t0 = jnp.maximum(t0, 0.0)     # inside the sphere -> clamp to origin
            span = t1 - t0

            ns = jnp.where(hit, jnp.ceil(span / BASE_STEP), 0.0)   # per-pixel step count
            step = span / jnp.maximum(ns, 1.0)                     # guarded: ns==0 never marches
            sample_transp = jnp.exp(step * _EXT_NEG)
            # step-invariant light coefficients (hoisted out of the march loop)
            sds = step * _SD
            coef_r = sds * LIGHT[0]
            coef_g = sds * LIGHT[1]
            coef_b = sds * LIGHT[2]

            n_steps = jnp.max(ns).astype(jnp.int32)   # dynamic march bound (chunk-wide max)
            t_init = t1 - 0.5 * step
            zeros = jnp.zeros_like(dx)
            ones = jnp.ones_like(dx)

            def body(i, carry):
                t, transp, rr, rg, rb = carry
                active = hit & (i.astype(jnp.float32) < ns)
                scale = jnp.where(active, sample_transp, 1.0)
                transp = transp * scale
                # light ray from sample point along (0, 1, 0); |d|==1
                lox = ocx + t * dx
                loy = ocy + t * dy
                loz = ocz + t * dz
                ld = rad2 - lox * lox - loz * loz          # discriminant / 4
                lt1 = jnp.sqrt(jnp.maximum(ld, 0.0)) - loy
                lmask = active & (ld >= 0.0) & (lt1 >= 0.0)
                latt = jnp.exp(lt1 * _LIGHT_K)
                base = jnp.where(lmask, latt * transp, 0.0)
                rr = (rr + base * coef_r) * scale
                rg = (rg + base * coef_g) * scale
                rb = (rb + base * coef_b) * scale
                return (t - step, transp, rr, rg, rb)

            _, transp, rr, rg, rb = lax.fori_loop(
                0, n_steps, body, (t_init, ones, zeros, zeros, zeros))

            # full (8,128) channel-slab stores (unmasked vst)
            or_ref[rows, :] = jnp.where(hit, BG[0] * transp + rr, BG[0])
            og_ref[rows, :] = jnp.where(hit, BG[1] * transp + rg, BG[1])
            ob_ref[rows, :] = jnp.where(hit, BG[2] * transp + rb, BG[2])

    return kernel


def ray_marcher_forward(scene, dirs):
    """scene: (1, 4) f32 [cx, cy, cz, radius]; dirs: (W, H, 3) f32.
    Returns pixels: (W, H, 3) f32."""
    assert scene.shape == (1, 4)
    W, H, _ = dirs.shape
    n = W * H

    rows = _cdiv(n, LANES)
    if rows <= CHUNK_ROWS:
        tile_rows = CHUNK_ROWS                           # tiny image: single small step
    elif rows <= 2 * MAX_TILE_ROWS:
        # split into >=2 grid steps so v7x megacore can shard the grid
        tile_rows = _round_up(_cdiv(rows, 2), CHUNK_ROWS)
    else:
        tile_rows = MAX_TILE_ROWS
    rows_pad = _round_up(rows, tile_rows)
    n_pad = rows_pad * LANES
    grid = rows_pad // tile_rows

    dirs_flat = dirs.reshape(n, 3).astype(jnp.float32)
    if n_pad != n:
        # padded rays; their results are discarded and they contribute ns based
        # only on their own intersection, so they cost ~nothing in the march.
        pad = jnp.broadcast_to(jnp.array([0.0, 0.0, 1.0], jnp.float32),
                               (n_pad - n, 3))
        dirs_flat = jnp.concatenate([dirs_flat, pad], axis=0)
    # channels-first slabs: (3, rows_pad, 128) -> pixels fill lanes AND sublanes
    dirs_cn = jnp.transpose(dirs_flat, (1, 0)).reshape(3, rows_pad, LANES)

    scene_flat = scene.reshape(4).astype(jnp.float32)

    out = pl.pallas_call(
        _make_kernel(tile_rows // CHUNK_ROWS),
        out_shape=jax.ShapeDtypeStruct((3, rows_pad, LANES), jnp.float32),
        grid=(grid,),
        in_specs=[
            pl.BlockSpec(memory_space=pltpu.MemorySpace.SMEM),            # scene scalars
            pl.BlockSpec((3, tile_rows, LANES), lambda i: (0, i, 0)),     # ray-dir slab
        ],
        out_specs=pl.BlockSpec((3, tile_rows, LANES), lambda i: (0, i, 0)),
        compiler_params=pltpu.CompilerParams(
            dimension_semantics=("parallel",)),
    )(scene_flat, dirs_cn)

    out = out.reshape(3, n_pad)[:, :n]
    return jnp.transpose(out, (1, 0)).reshape(W, H, 3)


# --------------------------- numpy reference --------------------------------
def _ref_integrate(ro, rd, center, radius):
    bg = np.array(BG, np.float32)
    a = float(rd @ rd)
    oc = ro - center
    b = 2.0 * float(rd @ oc)
    c = float(oc @ oc) - radius * radius
    d = b * b - 4.0 * a * c
    if d < 0:
        return bg
    sd = np.sqrt(d)
    t0 = (-b - sd) / (2 * a)
    t1 = (-b + sd) / (2 * a)
    if t0 < 0:
        if t1 < 0:
            return bg
        t0 = 0.0
    ns = np.ceil((t1 - t0) / BASE_STEP)
    step = (t1 - t0) / ns if ns > 0 else 0.0
    light_color = np.array(LIGHT, np.float32)
    transparency = 1.0
    result = np.zeros(3, np.float32)
    for i in range(int(ns)):
        t = t1 - (i + 0.5) * step
        p = ro + t * rd
        st = np.exp(-step * (SCATTERING + ABSORPTION + 0.4))
        transparency *= st
        loc = p - center
        lb = 2.0 * loc[1]
        lc = float(loc @ loc) - radius * radius
        ld = lb * lb - 4.0 * lc
        if ld >= 0:
            lsd = np.sqrt(ld)
            lt0 = (-lb - lsd) / 2.0
            lt1 = (-lb + lsd) / 2.0
            if not (lt0 < 0 and lt1 < 0):
                la = np.exp(-DENSITY * lt1 * (SCATTERING + ABSORPTION))
                result = result + la * light_color * transparency * SCATTERING * DENSITY * step
        result = result * st
    return bg * transparency + result


def _ref_forward(scene, dirs):
    scene = np.asarray(scene, np.float32)
    dirs = np.asarray(dirs, np.float32)
    center = scene[0, 0:3]
    radius = float(scene[0, 3])
    W, H, _ = dirs.shape
    out = np.zeros((W, H, 3), np.float32)
    ro = np.array(RAY_ORIGIN, np.float32)
    for i in range(W):
        for j in range(H):
            out[i, j, :] = _ref_integrate(ro, dirs[i, j, :], center, radius)
    return out


if __name__ == "__main__":
    key = jax.random.PRNGKey(0)
    scene = jnp.array([[0.0, 0.0, 0.0, 1.0]], jnp.float32)

    # Test 1: tiny image (single grid step, single chunk path).
    W, H = 16, 8
    k1, k2 = jax.random.split(key)
    xy = jax.random.uniform(k1, (W, H, 2), minval=-0.4, maxval=0.4,
                            dtype=jnp.float32)
    z = -jnp.ones((W, H, 1), jnp.float32)
    dirs = jnp.concatenate([xy, z], axis=-1)
    pixels = jax.block_until_ready(ray_marcher_forward(scene, dirs))
    ref = _ref_forward(np.asarray(scene), np.asarray(dirs))
    np.testing.assert_allclose(np.asarray(pixels), ref, rtol=2e-3, atol=2e-3)

    # Test 2: larger image (2 grid steps, 2 chunks per block, padded rows).
    W2, H2 = 64, 40
    xy2 = jax.random.uniform(k2, (W2, H2, 2), minval=-0.4, maxval=0.4,
                             dtype=jnp.float32)
    z2 = -jnp.ones((W2, H2, 1), jnp.float32)
    dirs2 = jnp.concatenate([xy2, z2], axis=-1)
    pixels2 = jax.block_until_ready(ray_marcher_forward(scene, dirs2))
    ref2 = _ref_forward(np.asarray(scene), np.asarray(dirs2))
    np.testing.assert_allclose(np.asarray(pixels2), ref2, rtol=2e-3, atol=2e-3)

    print("KERNEL_OK")
</pallas_src>

<mosaic_0001>
module attributes {stable_mosaic.version = 11 : i64} {
  func.func @kernel(%arg0: i32, %arg1: memref<4xf32, #tpu.memory_space<smem>>, %arg2: memref<3x8x128xf32, #tpu.memory_space<vmem>>, %arg3: memref<3x8x128xf32, #tpu.memory_space<vmem>>) attributes {dimension_semantics = [#tpu.dimension_semantics<parallel>], iteration_bounds = array<i64: 1>, scalar_prefetch = 0 : i64, scratch_operands = 0 : i64, tpu.core_type = #tpu.core_type<tc>, window_params = [{transform_indices = @transform_0, window_bounds = array<i64: 4>}, {transform_indices = @transform_1, window_bounds = array<i64: 3, 8, 128>}, {transform_indices = @transform_2, window_bounds = array<i64: 3, 8, 128>}]} {
    %c0 = arith.constant 0 : index
    %0 = memref.load %arg1[%c0] : memref<4xf32, #tpu.memory_space<smem>>
    %c1 = arith.constant 1 : index
    %1 = memref.load %arg1[%c1] : memref<4xf32, #tpu.memory_space<smem>>
    %c2 = arith.constant 2 : index
    %2 = memref.load %arg1[%c2] : memref<4xf32, #tpu.memory_space<smem>>
    %c3 = arith.constant 3 : index
    %3 = memref.load %arg1[%c3] : memref<4xf32, #tpu.memory_space<smem>>
    %cst = arith.constant 0.000000e+00 : f32
    %4 = arith.subf %cst, %0 : f32
    %cst_0 = arith.constant 0.000000e+00 : f32
    %5 = arith.subf %cst_0, %1 : f32
    %cst_1 = arith.constant 3.000000e+00 : f32
    %6 = arith.subf %cst_1, %2 : f32
    %7 = arith.mulf %3, %3 : f32
    %8 = arith.mulf %4, %4 : f32
    %9 = arith.mulf %5, %5 : f32
    %10 = arith.addf %8, %9 : f32
    %11 = arith.mulf %6, %6 : f32
    %12 = arith.addf %10, %11 : f32
    %13 = arith.subf %12, %7 : f32
    %c0_i32 = arith.constant 0 : i32
    %c1_i32 = arith.constant 1 : i32
    %c2_i32 = arith.constant 2 : i32
    %c0_i32_2 = arith.constant 0 : i32
    %c1_i32_3 = arith.constant 1 : i32
    %c2_i32_4 = arith.constant 2 : i32
    %c0_i32_5 = arith.constant 0 : i32
    %c1_i32_6 = arith.constant 1 : i32
    %14 = arith.muli %c0_i32_5, %c1_i32_6 : i32
    %c0_i32_7 = arith.constant 0 : i32
    %15 = arith.addi %c0_i32_7, %14 : i32
    %c8_i32 = arith.constant 8 : i32
    %16 = arith.muli %15, %c8_i32 : i32
    %17 = tpu.assume_multiple %16, 8 : i32
    %c0_i32_8 = arith.constant 0 : i32
    %c0_i32_9 = arith.constant 0 : i32
    %18 = tpu.memref_slice %arg2[%c0_i32, %c0_i32_8, %c0_i32_9] : memref<3x8x128xf32, #tpu.memory_space<vmem>> -> memref<1x8x128xf32, #tpu.memory_space<vmem>>
    %19 = tpu.memref_squeeze %18 : memref<1x8x128xf32, #tpu.memory_space<vmem>> -> memref<8x128xf32, #tpu.memory_space<vmem>>
    %20 = arith.index_cast %17 : i32 to index
    %c0_10 = arith.constant 0 : index
    %21 = vector.load %19[%20, %c0_10] : memref<8x128xf32, #tpu.memory_space<vmem>>, vector<8x128xf32>
    %c0_i32_11 = arith.constant 0 : i32
    %c0_i32_12 = arith.constant 0 : i32
    %22 = tpu.memref_slice %arg2[%c1_i32, %c0_i32_11, %c0_i32_12] : memref<3x8x128xf32, #tpu.memory_space<vmem>> -> memref<1x8x128xf32, #tpu.memory_space<vmem>>
    %23 = tpu.memref_squeeze %22 : memref<1x8x128xf32, #tpu.memory_space<vmem>> -> memref<8x128xf32, #tpu.memory_space<vmem>>
    %24 = arith.index_cast %17 : i32 to index
    %c0_13 = arith.constant 0 : index
    %25 = vector.load %23[%24, %c0_13] : memref<8x128xf32, #tpu.memory_space<vmem>>, vector<8x128xf32>
    %c0_i32_14 = arith.constant 0 : i32
    %c0_i32_15 = arith.constant 0 : i32
    %26 = tpu.memref_slice %arg2[%c2_i32, %c0_i32_14, %c0_i32_15] : memref<3x8x128xf32, #tpu.memory_space<vmem>> -> memref<1x8x128xf32, #tpu.memory_space<vmem>>
    %27 = tpu.memref_squeeze %26 : memref<1x8x128xf32, #tpu.memory_space<vmem>> -> memref<8x128xf32, #tpu.memory_space<vmem>>
    %28 = arith.index_cast %17 : i32 to index
    %c0_16 = arith.constant 0 : index
    %29 = vector.load %27[%28, %c0_16] : memref<8x128xf32, #tpu.memory_space<vmem>>, vector<8x128xf32>
    %30 = arith.mulf %21, %21 : vector<8x128xf32>
    %31 = arith.mulf %25, %25 : vector<8x128xf32>
    %32 = arith.addf %30, %31 : vector<8x128xf32>
    %33 = arith.mulf %29, %29 : vector<8x128xf32>
    %34 = arith.addf %32, %33 : vector<8x128xf32>
    %35 = vector.broadcast %4 : f32 to vector<8x128xf32>
    %36 = arith.mulf %21, %35 : vector<8x128xf32>
    %37 = vector.broadcast %5 : f32 to vector<8x128xf32>
    %38 = arith.mulf %25, %37 : vector<8x128xf32>
    %39 = arith.addf %36, %38 : vector<8x128xf32>
    %40 = vector.broadcast %6 : f32 to vector<8x128xf32>
    %41 = arith.mulf %29, %40 : vector<8x128xf32>
    %42 = arith.addf %39, %41 : vector<8x128xf32>
    %cst_17 = arith.constant 2.000000e+00 : f32
    %43 = vector.broadcast %cst_17 : f32 to vector<8x128xf32>
    %44 = arith.mulf %43, %42 : vector<8x128xf32>
    %45 = arith.mulf %44, %44 : vector<8x128xf32>
    %cst_18 = arith.constant 4.000000e+00 : f32
    %46 = vector.broadcast %cst_18 : f32 to vector<8x128xf32>
    %47 = arith.mulf %46, %34 : vector<8x128xf32>
    %48 = vector.broadcast %13 : f32 to vector<8x128xf32>
    %49 = arith.mulf %47, %48 : vector<8x128xf32>
    %50 = arith.subf %45, %49 : vector<8x128xf32>
    %cst_19 = arith.constant 0.000000e+00 : f32
    %51 = vector.broadcast %cst_19 : f32 to vector<8x128xf32>
    %52 = arith.maximumf %50, %51 : vector<8x128xf32>
    %53 = math.sqrt %52 : vector<8x128xf32>
    %cst_20 = arith.constant 2.000000e+00 : f32
    %54 = vector.broadcast %cst_20 : f32 to vector<8x128xf32>
    %55 = arith.mulf %54, %34 : vector<8x128xf32>
    %cst_21 = arith.constant 1.000000e+00 : f32
    %56 = vector.broadcast %cst_21 : f32 to vector<8x128xf32>
    %57 = arith.divf %56, %55 : vector<8x128xf32>
    %cst_22 = arith.constant 0.000000e+00 : f32
    %58 = vector.broadcast %cst_22 : f32 to vector<8x128xf32>
    %59 = arith.subf %58, %44 : vector<8x128xf32>
    %60 = arith.subf %59, %53 : vector<8x128xf32>
    %61 = arith.mulf %60, %57 : vector<8x128xf32>
    %cst_23 = arith.constant 0.000000e+00 : f32
    %62 = vector.broadcast %cst_23 : f32 to vector<8x128xf32>
    %63 = arith.subf %62, %44 : vector<8x128xf32>
    %64 = arith.addf %63, %53 : vector<8x128xf32>
    %65 = arith.mulf %64, %57 : vector<8x128xf32>
    %cst_24 = arith.constant 0.000000e+00 : f32
    %66 = vector.broadcast %cst_24 : f32 to vector<8x128xf32>
    %67 = arith.cmpf oge, %50, %66 : vector<8x128xf32>
    %cst_25 = arith.constant 0.000000e+00 : f32
    %68 = vector.broadcast %cst_25 : f32 to vector<8x128xf32>
    %69 = arith.cmpf oge, %65, %68 : vector<8x128xf32>
    %70 = arith.andi %67, %69 : vector<8x128xi1>
    %cst_26 = arith.constant 0.000000e+00 : f32
    %71 = vector.broadcast %cst_26 : f32 to vector<8x128xf32>
    %72 = arith.maximumf %61, %71 : vector<8x128xf32>
    %73 = arith.subf %65, %72 : vector<8x128xf32>
    %cst_27 = arith.constant 2.000000e-01 : f32
    %74 = vector.broadcast %cst_27 : f32 to vector<8x128xf32>
    %75 = arith.divf %73, %74 : vector<8x128xf32>
    %76 = math.ceil %75 : vector<8x128xf32>
    %cst_28 = arith.constant 0.000000e+00 : f32
    %77 = vector.broadcast %cst_28 : f32 to vector<8x128xf32>
    %78 = arith.select %70, %76, %77 : vector<8x128xi1>, vector<8x128xf32>
    %cst_29 = arith.constant 1.000000e+00 : f32
    %79 = vector.broadcast %cst_29 : f32 to vector<8x128xf32>
    %80 = arith.maximumf %78, %79 : vector<8x128xf32>
    %81 = arith.divf %73, %80 : vector<8x128xf32>
    %cst_30 = arith.constant -6.000000e-01 : f32
    %82 = vector.broadcast %cst_30 : f32 to vector<8x128xf32>
    %83 = arith.mulf %81, %82 : vector<8x128xf32>
    %84 = math.exp %83 : vector<8x128xf32>
    %cst_31 = arith.constant 6.000000e-01 : f32
    %85 = vector.broadcast %cst_31 : f32 to vector<8x128xf32>
    %86 = arith.mulf %81, %85 : vector<8x128xf32>
    %cst_32 = arith.constant 1.300000e+00 : f32
    %87 = vector.broadcast %cst_32 : f32 to vector<8x128xf32>
    %88 = arith.mulf %86, %87 : vector<8x128xf32>
    %cst_33 = arith.constant 3.000000e-01 : f32
    %89 = vector.broadcast %cst_33 : f32 to vector<8x128xf32>
    %90 = arith.mulf %86, %89 : vector<8x128xf32>
    %cst_34 = arith.constant 0.899999976 : f32
    %91 = vector.broadcast %cst_34 : f32 to vector<8x128xf32>
    %92 = arith.mulf %86, %91 : vector<8x128xf32>
    %93 = vector.shape_cast %78 : vector<8x128xf32> to vector<1x8x128xf32>
    %cst_35 = arith.constant dense<0xFF800000> : vector<1xf32>
    %94 = vector.multi_reduction <maximumf>, %93, %cst_35 [1, 2] : vector<1x8x128xf32> to vector<1xf32>
    %95 = vector.shape_cast %94 : vector<1xf32> to vector<1x1x1xf32>
    %96 = vector.extract %95[0, 0, 0] : f32 from vector<1x1x1xf32>
    %97 = arith.fptosi %96 : f32 to i32
    %cst_36 = arith.constant 5.000000e-01 : f32
    %98 = vector.broadcast %cst_36 : f32 to vector<8x128xf32>
    %99 = arith.mulf %98, %81 : vector<8x128xf32>
    %100 = arith.subf %65, %99 : vector<8x128xf32>
    %cst_37 = arith.constant 0.000000e+00 : f32
    %101 = vector.broadcast %cst_37 : f32 to vector<8x128xf32>
    %cst_38 = arith.constant 1.000000e+00 : f32
    %102 = vector.broadcast %cst_38 : f32 to vector<8x128xf32>
    %c0_i32_39 = arith.constant 0 : i32
    %103 = arith.subi %97, %c0_i32_39 : i32
    %104 = arith.addi %c0_i32_39, %103 : i32
    %c1_i32_40 = arith.constant 1 : i32
    %105:5 = scf.for %arg4 = %c0_i32_39 to %104 step %c1_i32_40 iter_args(%arg5 = %100, %arg6 = %102, %arg7 = %101, %arg8 = %101, %arg9 = %101) -> (vector<8x128xf32>, vector<8x128xf32>, vector<8x128xf32>, vector<8x128xf32>, vector<8x128xf32>)  : i32 {
      %133 = arith.sitofp %arg4 : i32 to f32
      %134 = vector.broadcast %133 : f32 to vector<8x128xf32>
      %135 = arith.cmpf olt, %134, %78 : vector<8x128xf32>
      %136 = arith.andi %70, %135 : vector<8x128xi1>
      %cst_57 = arith.constant 1.000000e+00 : f32
      %137 = vector.broadcast %cst_57 : f32 to vector<8x128xf32>
      %138 = arith.select %136, %84, %137 : vector<8x128xi1>, vector<8x128xf32>
      %139 = arith.mulf %arg6, %138 : vector<8x128xf32>
      %140 = arith.mulf %arg5, %21 : vector<8x128xf32>
      %141 = vector.broadcast %4 : f32 to vector<8x128xf32>
      %142 = arith.addf %141, %140 : vector<8x128xf32>
      %143 = arith.mulf %arg5, %25 : vector<8x128xf32>
      %144 = vector.broadcast %5 : f32 to vector<8x128xf32>
      %145 = arith.addf %144, %143 : vector<8x128xf32>
      %146 = arith.mulf %arg5, %29 : vector<8x128xf32>
      %147 = vector.broadcast %6 : f32 to vector<8x128xf32>
      %148 = arith.addf %147, %146 : vector<8x128xf32>
      %149 = arith.mulf %142, %142 : vector<8x128xf32>
      %150 = vector.broadcast %7 : f32 to vector<8x128xf32>
      %151 = arith.subf %150, %149 : vector<8x128xf32>
      %152 = arith.mulf %148, %148 : vector<8x128xf32>
      %153 = arith.subf %151, %152 : vector<8x128xf32>
      %cst_58 = arith.constant 0.000000e+00 : f32
      %154 = vector.broadcast %cst_58 : f32 to vector<8x128xf32>
      %155 = arith.maximumf %153, %154 : vector<8x128xf32>
      %156 = math.sqrt %155 : vector<8x128xf32>
      %157 = arith.subf %156, %145 : vector<8x128xf32>
      %cst_59 = arith.constant 0.000000e+00 : f32
      %158 = vector.broadcast %cst_59 : f32 to vector<8x128xf32>
      %159 = arith.cmpf oge, %153, %158 : vector<8x128xf32>
      %160 = arith.andi %136, %159 : vector<8x128xi1>
      %cst_60 = arith.constant 0.000000e+00 : f32
      %161 = vector.broadcast %cst_60 : f32 to vector<8x128xf32>
      %162 = arith.cmpf oge, %157, %161 : vector<8x128xf32>
      %163 = arith.andi %160, %162 : vector<8x128xi1>
      %cst_61 = arith.constant -1.200000e+00 : f32
      %164 = vector.broadcast %cst_61 : f32 to vector<8x128xf32>
      %165 = arith.mulf %157, %164 : vector<8x128xf32>
      %166 = math.exp %165 : vector<8x128xf32>
      %167 = arith.mulf %166, %139 : vector<8x128xf32>
      %cst_62 = arith.constant 0.000000e+00 : f32
      %168 = vector.broadcast %cst_62 : f32 to vector<8x128xf32>
      %169 = arith.select %163, %167, %168 : vector<8x128xi1>, vector<8x128xf32>
      %170 = arith.mulf %169, %88 : vector<8x128xf32>
      %171 = arith.addf %arg7, %170 : vector<8x128xf32>
      %172 = arith.mulf %171, %138 : vector<8x128xf32>
      %173 = arith.mulf %169, %90 : vector<8x128xf32>
      %174 = arith.addf %arg8, %173 : vector<8x128xf32>
      %175 = arith.mulf %174, %138 : vector<8x128xf32>
      %176 = arith.mulf %169, %92 : vector<8x128xf32>
      %177 = arith.addf %arg9, %176 : vector<8x128xf32>
      %178 = arith.mulf %177, %138 : vector<8x128xf32>
      %179 = arith.subf %arg5, %81 : vector<8x128xf32>
      scf.yield %179, %139, %172, %175, %178 : vector<8x128xf32>, vector<8x128xf32>, vector<8x128xf32>, vector<8x128xf32>, vector<8x128xf32>
    }
    %cst_41 = arith.constant 5.720000e-01 : f32
    %106 = vector.broadcast %cst_41 : f32 to vector<8x128xf32>
    %107 = arith.mulf %106, %105#1 : vector<8x128xf32>
    %108 = arith.addf %107, %105#2 : vector<8x128xf32>
    %cst_42 = arith.constant 5.720000e-01 : f32
    %109 = vector.broadcast %cst_42 : f32 to vector<8x128xf32>
    %110 = arith.select %70, %108, %109 : vector<8x128xi1>, vector<8x128xf32>
    %c0_i32_43 = arith.constant 0 : i32
    %c0_i32_44 = arith.constant 0 : i32
    %111 = tpu.memref_slice %arg3[%c0_i32_2, %c0_i32_43, %c0_i32_44] : memref<3x8x128xf32, #tpu.memory_space<vmem>> -> memref<1x8x128xf32, #tpu.memory_space<vmem>>
    %112 = tpu.memref_squeeze %111 : memref<1x8x128xf32, #tpu.memory_space<vmem>> -> memref<8x128xf32, #tpu.memory_space<vmem>>
    %113 = arith.index_cast %17 : i32 to index
    %c0_45 = arith.constant 0 : index
    %114 = vector.load %112[%113, %c0_45] : memref<8x128xf32, #tpu.memory_space<vmem>>, vector<8x128xf32>
    tpu.vector_store %112[%113, %c0_45], %110 {strides = array<i32>} : memref<8x128xf32, #tpu.memory_space<vmem>>, vector<8x128xf32>,
    %cst_46 = arith.constant 7.720000e-01 : f32
    %115 = vector.broadcast %cst_46 : f32 to vector<8x128xf32>
    %116 = arith.mulf %115, %105#1 : vector<8x128xf32>
    %117 = arith.addf %116, %105#3 : vector<8x128xf32>
    %cst_47 = arith.constant 7.720000e-01 : f32
    %118 = vector.broadcast %cst_47 : f32 to vector<8x128xf32>
    %119 = arith.select %70, %117, %118 : vector<8x128xi1>, vector<8x128xf32>
    %c0_i32_48 = arith.constant 0 : i32
    %c0_i32_49 = arith.constant 0 : i32
    %120 = tpu.memref_slice %arg3[%c1_i32_3, %c0_i32_48, %c0_i32_49] : memref<3x8x128xf32, #tpu.memory_space<vmem>> -> memref<1x8x128xf32, #tpu.memory_space<vmem>>
    %121 = tpu.memref_squeeze %120 : memref<1x8x128xf32, #tpu.memory_space<vmem>> -> memref<8x128xf32, #tpu.memory_space<vmem>>
    %122 = arith.index_cast %17 : i32 to index
    %c0_50 = arith.constant 0 : index
    %123 = vector.load %121[%122, %c0_50] : memref<8x128xf32, #tpu.memory_space<vmem>>, vector<8x128xf32>
    tpu.vector_store %121[%122, %c0_50], %119 {strides = array<i32>} : memref<8x128xf32, #tpu.memory_space<vmem>>, vector<8x128xf32>,
    %cst_51 = arith.constant 9.210000e-01 : f32
    %124 = vector.broadcast %cst_51 : f32 to vector<8x128xf32>
    %125 = arith.mulf %124, %105#1 : vector<8x128xf32>
    %126 = arith.addf %125, %105#4 : vector<8x128xf32>
    %cst_52 = arith.constant 9.210000e-01 : f32
    %127 = vector.broadcast %cst_52 : f32 to vector<8x128xf32>
    %128 = arith.select %70, %126, %127 : vector<8x128xi1>, vector<8x128xf32>
    %c0_i32_53 = arith.constant 0 : i32
    %c0_i32_54 = arith.constant 0 : i32
    %129 = tpu.memref_slice %arg3[%c2_i32_4, %c0_i32_53, %c0_i32_54] : memref<3x8x128xf32, #tpu.memory_space<vmem>> -> memref<1x8x128xf32, #tpu.memory_space<vmem>>
    %130 = tpu.memref_squeeze %129 : memref<1x8x128xf32, #tpu.memory_space<vmem>> -> memref<8x128xf32, #tpu.memory_space<vmem>>
    %131 = arith.index_cast %17 : i32 to index
    %c0_55 = arith.constant 0 : index
    %132 = vector.load %130[%131, %c0_55] : memref<8x128xf32, #tpu.memory_space<vmem>>, vector<8x128xf32>
    tpu.vector_store %130[%131, %c0_55], %128 {strides = array<i32>} : memref<8x128xf32, #tpu.memory_space<vmem>>, vector<8x128xf32>,
    %c1_i32_56 = arith.constant 1 : i32
    return
  }
  func.func @transform_0(%arg0: i32) -> i32 {
    %c0_i32 = arith.constant 0 : i32
    %c0_i32_0 = arith.constant 0 : i32
    return %c0_i32 : i32
  }
  func.func @transform_1(%arg0: i32) -> (i32, i32, i32) {
    %c0_i32 = arith.constant 0 : i32
    %c0_i32_0 = arith.constant 0 : i32
    %c0_i32_1 = arith.constant 0 : i32
    return %c0_i32, %arg0, %c0_i32_0 : i32, i32, i32
  }
  func.func @transform_2(%arg0: i32) -> (i32, i32, i32) {
    %c0_i32 = arith.constant 0 : i32
    %c0_i32_0 = arith.constant 0 : i32
    %c0_i32_1 = arith.constant 0 : i32
    return %c0_i32, %arg0, %c0_i32_0 : i32, i32, i32
  }
}

</mosaic_0001>

<llo_original>
// kernel: tpu_custom_call.1
$region0: #{tpu_custom_call.1}
  #allocation0 [shape = 'u32[]', space=smem, size = 0x4, offset = 0x4, fixed_abs, tag = 'smem constant byte address 0x4 - core index']
  #allocation1 [shape = 'u32[72,128]{1,0:T(1,128)}', space=vmem, size = 0x9000, scoped, tag = 'internal scratch']
  %s0 = inlined_call_operand.hbm [shape: f32[4], index: 0, kind: input, shape index: {}]
  %s1 = inlined_call_operand.hbm [shape: f32[3,8,128], index: 1, kind: input, shape index: {}]
  %s2 = inlined_call_operand.hbm [shape: f32[3,8,128], index: 2, kind: output, shape index: {}]
  %s3 = sld [smem:[#allocation0]]
  $region33: #{tpu_custom_call.1} parent=0
    _
  %s5 = ssub.s32 1, %s3
  %s6 = scalar_select 0, %s5, %s3
  $region1: #{tpu_custom_call.1} parent=0
    #allocation2 [shape = 'u8[512]{0}', space=smem, size = 0x200, scoped, tag = 'input window, operand 0, single buffered']
    #allocation3 [shape = 's32[1]{0}', space=sflag, size = 0x4, scoped, tag = 'scoped memory for tpu_custom_call.1']
    #allocation4 [shape = 's32[1]{0}', space=sflag, size = 0x4, scoped, tag = 'scoped memory for tpu_custom_call.1']
    #allocation5 [shape = 's32[1]{0}', space=sflag, size = 0x4, scoped, tag = 'scoped memory for tpu_custom_call.1']
    #allocation6 [shape = 'u8[12288]{0}', space=vmem, size = 0x3000, scoped, tag = 'input window, operand 1, single buffered']
    #allocation7 [shape = 'u8[12288]{0}', space=vmem, size = 0x3000, scoped, tag = 'output window, operand 0, single buffered']
    %7 = vsyncpa [#allocation5], 0
    %8 = vsyncpa [#allocation3], 0
    %9 = vsyncpa [#allocation4], 0
    // Predicated region
    $region2: #{tpu_custom_call.1} parent=1 // pred_check
      _
    $region3: #{tpu_custom_call.1} parent=1 // pred_check_branch
      %11 = sbr.rel (0) target = $region5
    $region4: #{tpu_custom_call.1} parent=1 // pred_region
      %13 = vsyncadd [#allocation5], 0
      %s15 = sshll.u32 %s0, 4
      %s16 = int_to_ptr.hbm [resolvable:$true] %s15
      %18 = dma.hbm_to_smem %s16, 16, [#allocation2], [#allocation5]
    $region5: #{tpu_custom_call.1} parent=1 // pred_fallthru
      _
    // Predicated region
    $region6: #{tpu_custom_call.1} parent=1 // pred_check
      _
    $region7: #{tpu_custom_call.1} parent=1 // pred_check_branch
      %20 = sbr.rel (0) target = $region9
    $region8: #{tpu_custom_call.1} parent=1 // pred_region
      %22 = vsyncadd [#allocation3], 0
      %s23 = sshll.u32 %s1, 4
      %s24 = int_to_ptr.hbm [resolvable:$true] %s23
      %s25 = sshll.u32 [#allocation6], 4
      %s26 = int_to_ptr.vmem [resolvable:$true] %s25
      %31 = dma.hbm_to_vmem [thread:$0]  %s24, 384, %s26, [#allocation3], 128, 128, 8
    $region9: #{tpu_custom_call.1} parent=1 // pred_fallthru
      _
    // Predicated region
    $region10: #{tpu_custom_call.1} parent=1 // pred_check
      _
    $region11: #{tpu_custom_call.1} parent=1 // pred_check_branch
      %33 = sbr.rel (0) target = $region13
    $region12: #{tpu_custom_call.1} parent=1 // pred_region
      %35 = dma.done [#allocation5], 16
    $region13: #{tpu_custom_call.1} parent=1 // pred_fallthru
      _
    // Predicated region
    $region14: #{tpu_custom_call.1} parent=1 // pred_check
      _
    $region15: #{tpu_custom_call.1} parent=1 // pred_check_branch
      %37 = sbr.rel (0) target = $region17
    $region16: #{tpu_custom_call.1} parent=1 // pred_region
      %39 = dma.done [#allocation3], 384
    $region17: #{tpu_custom_call.1} parent=1 // pred_fallthru
      _
    %40 = sfence
    %s41 = sld [smem:[#allocation2]]
    %s42 = sld [smem:[#allocation2 + $0x1]]
    %s43 = sld [smem:[#allocation2 + $0x2]]
    %s44 = sld [smem:[#allocation2 + $0x3]]
    %s45 = ssub.f32 0.0, %s41
    %s46 = ssub.f32 0.0, %s42
    %s47 = ssub.f32 3.0, %s43
    %s48 = smul.f32 %s44, %s44
    %s49 = smul.f32 %s45, %s45
    %s50 = smul.f32 %s46, %s46
    %s51 = sadd.f32 %s49, %s50
    %s52 = smul.f32 %s47, %s47
    %s53 = sadd.f32 %s51, %s52
    %s54 = ssub.f32 %s53, %s48
    %v55 = vld [vmem:[#allocation6] sm:$0xff]
    %s56 = scalar_lea.vmem [#allocation6], 8
    %v57 = vld [vmem:[%s56] sm:$0xff]
    %s58 = scalar_lea.vmem [#allocation6], 16
    %v59 = vld [vmem:[%s58] sm:$0xff]
    %v60 = vmul.f32 %v55, %v55
    %v61 = vmul.f32 %v57, %v57
    %v62 = vadd.f32 %v60, %v61
    %v63 = vmul.f32 %v59, %v59
    %v64 = vadd.f32 %v62, %v63
    %v65 = vstv %s45
    %v66 = vmul.f32 %v55, %v65
    %v67 = vstv %s46
    %v68 = vmul.f32 %v57, %v67
    %v69 = vadd.f32 %v66, %v68
    %v70 = vstv %s47
    %v71 = vmul.f32 %v59, %v70
    %v72 = vadd.f32 %v69, %v71
    %v73 = vmul.f32 %v72, 2.0
    %v74 = vmul.f32 %v73, %v73
    %v75 = vmul.f32 %v64, 4.0
    %v76 = vstv %s54
    %v77 = vmul.f32 %v75, %v76
    %v78 = vsub.f32 %v74, %v77
    %v79 = vmax.f32 %v78, 0.0
    %v80 = vrsqrt.pop %v79
    %v81 = vmul.f32 %v80, %v79
    %v82 = vmul.f32 %v81, %v80
    %v83 = vmul.f32 0.5, %v82
    %v84 = vsub.f32 1.5, %v83
    %v85 = vmul.f32 %v80, %v84
    %v86 = vmul.f32 %v79, %v85
    %vm87 = vcmp.eq.f32.partialorder %v79, inf
    %v88 = vsel %vm87, %v79, %v86
    %vm89 = vcmp.eq.f32.partialorder %v79, 0.0
    %v90 = vand.u32 %v79, 2147483648
    %v91 = vsel %vm89, %v90, %v88
    %v92 = vmul.f32 %v64, 2.0
    %v93 = vrcp.pop %v92
    %v94 = vmul.f32 %v92, %v93
    %v95 = vsub.f32 1.0, %v94
    %v96 = vmul.f32 %v93, %v95
    %v97 = vadd.f32 %v93, %v96
    %vm98 = vweird.f32 %v92
    %vm99 = vweird.f32 %v93
    %vm100 = vmor %vm98, %vm99
    %v101 = vsel %vm100, %v93, %v97
    %v102 = vand.u32 2147483647, %v92
    %vm103 = vcmp.eq.f32.partialorder %v102, 8.507059e+37
    %v104 = vand.u32 %v92, 2147483648
    %v105 = vor.u32 1.1754944e-38, %v104
    %v106 = vsel %vm103, %v105, %v101
    %v107 = vmul.f32 1.0, %v106
    %v108 = vsub.f32 0.0, %v73
    %v109 = vsub.f32 %v108, %v91
    %v110 = vmul.f32 %v109, %v107
    %v111 = vadd.f32 %v108, %v91
    %v112 = vmul.f32 %v111, %v107
    %vm113 = vcmp.ge.f32.partialorder %v78, 0.0
    %vm114 = vcmp.ge.f32.partialorder %v112, 0.0
    %vm115 = vmand %vm113, %vm114
    %v116 = vmax.f32 %v110, 0.0
    %v117 = vsub.f32 %v112, %v116
    %v118 = vrcp.pop 0.2
    %v119 = vmul.f32 0.2, %v118
    %v120 = vsub.f32 1.0, %v119
    %v121 = vmul.f32 %v118, %v120
    %v122 = vadd.f32 %v118, %v121
    %vm123 = vweird.f32 %v118
    %v124 = vsel %vm123, %v118, %v122
    %v125 = vmul.f32 %v117, %v124
    %v126 = vceil.f32 %v125
    %v127 = vsel %vm115, %v126, 0.0
    %v128 = vmax.f32 %v127, 1.0
    %v129 = vrcp.pop %v128
    %v130 = vmul.f32 %v128, %v129
    %v131 = vsub.f32 1.0, %v130
    %v132 = vmul.f32 %v129, %v131
    %v133 = vadd.f32 %v129, %v132
    %vm134 = vweird.f32 %v128
    %vm135 = vweird.f32 %v129
    %vm136 = vmor %vm134, %vm135
    %v137 = vsel %vm136, %v129, %v133
    %v138 = vand.u32 2147483647, %v128
    %vm139 = vcmp.eq.f32.partialorder %v138, 8.507059e+37
    %v140 = vand.u32 %v128, 2147483648
    %v141 = vor.u32 1.1754944e-38, %v140
    %v142 = vsel %vm139, %v141, %v137
    %v143 = vmul.f32 %v117, %v142
    %v144 = vmul.f32 %v143, -0.6
    %v145 = vmul.f32 %v144, 1.442695
    %v146 = vpow.pop %v145
    %v147 = vmul.f32 %v143, 0.6
    %v148 = vmul.f32 %v147, 1.3
    %v149 = vmul.f32 %v147, 0.3
    %v150 = vmul.f32 %v147, 0.9
    %151 = vmax.xlane.f32.xlu0 %v127
    %v152 = vpop.xlane.xlu0 %151
    %v153 = vrot.slane %v152, 4
    %v154 = vmax.f32 %v152, %v153
    %v155 = vrot.slane %v154, 2
    %v156 = vmax.f32 %v154, %v155
    %v157 = vrot.slane %v156, 1
    %v158 = vmax.f32 %v156, %v157
    %s159 = vtos %v158
    %s160 = scvt.f32.s32.to.zero.pseudo %s159
    %v161 = vmul.f32 %v143, 0.5
    %v162 = vsub.f32 %v112, %v161
    // While loop
    $region18: #{tpu_custom_call.1} parent=1 // loop_pre_header
      _
    $region19: #{tpu_custom_call.1} parent=1 // loop_header
      %s164 = sphi 0, %s166
      %p165 = scmp.ge.s32.totalorder %s164, %s160
      %v169 = vphi %v162, %v223
      %v170 = vphi 1.0, %v179
      %v171 = vphi 0.0, %v216
      %v172 = vphi 0.0, %v219
      %v173 = vphi 0.0, %v222
    $region20: #{tpu_custom_call.1} parent=1 // loop_header_branch
      %168 = sbr.rel (%p165) target = $region24
    $region21: #{tpu_custom_call.1} parent=1 // loop_body
      %s174 = scvt.s32.f32 %s164
      %v175 = vstv %s174
      %vm176 = vcmp.lt.f32.partialorder %v175, %v127
      %vm177 = vmand %vm115, %vm176
      %v178 = vsel %vm177, %v146, 1.0
      %v179 = vmul.f32 %v170, %v178
      %v180 = vmul.f32 %v169, %v55
      %v181 = vadd.f32 %v65, %v180
      %v182 = vmul.f32 %v169, %v57
      %v183 = vadd.f32 %v67, %v182
      %v184 = vmul.f32 %v169, %v59
      %v185 = vadd.f32 %v70, %v184
      %v186 = vmul.f32 %v181, %v181
      %v187 = vstv %s48
      %v188 = vsub.f32 %v187, %v186
      %v189 = vmul.f32 %v185, %v185
      %v190 = vsub.f32 %v188, %v189
      %v191 = vmax.f32 %v190, 0.0
      %v192 = vrsqrt.pop %v191
      %v193 = vmul.f32 %v192, %v191
      %v194 = vmul.f32 %v193, %v192
      %v195 = vmul.f32 0.5, %v194
      %v196 = vsub.f32 1.5, %v195
      %v197 = vmul.f32 %v192, %v196
      %v198 = vmul.f32 %v191, %v197
      %vm199 = vcmp.eq.f32.partialorder %v191, inf
      %v200 = vsel %vm199, %v191, %v198
      %vm201 = vcmp.eq.f32.partialorder %v191, 0.0
      %v202 = vand.u32 %v191, 2147483648
      %v203 = vsel %vm201, %v202, %v200
      %v204 = vsub.f32 %v203, %v183
      %vm205 = vcmp.ge.f32.partialorder %v190, 0.0
      %vm206 = vmand %vm177, %vm205
      %vm207 = vcmp.ge.f32.partialorder %v204, 0.0
      %vm208 = vmand %vm206, %vm207
      %v209 = vmul.f32 %v204, -1.2
      %v210 = vmul.f32 %v209, 1.442695
      %v211 = vpow.pop %v210
      %v212 = vmul.f32 %v211, %v179
      %v213 = vsel %vm208, %v212, 0.0
      %v214 = vmul.f32 %v213, %v148
      %v215 = vadd.f32 %v171, %v214
      %v216 = vmul.f32 %v215, %v178
      %v217 = vmul.f32 %v213, %v149
      %v218 = vadd.f32 %v172, %v217
      %v219 = vmul.f32 %v218, %v178
      %v220 = vmul.f32 %v213, %v150
      %v221 = vadd.f32 %v173, %v220
      %v222 = vmul.f32 %v221, %v178
      %v223 = vsub.f32 %v169, %v143
    $region22: #{tpu_custom_call.1} parent=1 // loop_footer
      %s166 = sadd.s32 %s164, 1
    $region23: #{tpu_custom_call.1} parent=1 // loop_footer_branch
      %163 = sbr.rel target = $region19
    $region24: #{tpu_custom_call.1} parent=1 // loop_exit
      _
    %v224 = vmul.f32 %v170, 0.572
    %v225 = vadd.f32 %v224, %v171
    %v226 = vsel %vm115, %v225, 0.572
    %227 = vst [vmem:[#allocation7] sm:$0xff] %v226
    %v228 = vmul.f32 %v170, 0.772
    %v229 = vadd.f32 %v228, %v172
    %v230 = vsel %vm115, %v229, 0.772
    %s231 = scalar_lea.vmem [#allocation7], 8
    %232 = vst [vmem:[%s231] sm:$0xff] %v230
    %v233 = vmul.f32 %v170, 0.921
    %v234 = vadd.f32 %v233, %v173
    %v235 = vsel %vm115, %v234, 0.921
    %s236 = scalar_lea.vmem [#allocation7], 16
    %237 = vst [vmem:[%s236] sm:$0xff] %v235
    // Predicated region
    $region25: #{tpu_custom_call.1} parent=1 // pred_check
      _
    $region26: #{tpu_custom_call.1} parent=1 // pred_check_branch
      %239 = sbr.rel (0) target = $region28
    $region27: #{tpu_custom_call.1} parent=1 // pred_region
      %241 = vsyncadd [#allocation4], 0
      %s242 = sshll.u32 [#allocation7], 4
      %s243 = int_to_ptr.vmem [resolvable:$true] %s242
      %s244 = sshll.u32 %s2, 4
      %s245 = int_to_ptr.hbm [resolvable:$true] %s244
      %250 = dma.vmem_to_hbm [thread:$0]  %s243, 384, %s245, [#allocation4], 128, 128, 8
    $region28: #{tpu_custom_call.1} parent=1 // pred_fallthru
      _
    // Predicated region
    $region29: #{tpu_custom_call.1} parent=1 // pred_check
      _
    $region30: #{tpu_custom_call.1} parent=1 // pred_check_branch
      %252 = sbr.rel (0) target = $region32
    $region31: #{tpu_custom_call.1} parent=1 // pred_region
      %254 = dma.done [#allocation4], 384
    $region32: #{tpu_custom_call.1} parent=1 // pred_fallthru
      _
    %255 = vsyncpa [#allocation3], 1
    %256 = vsyncpa [#allocation4], 1
    %257 = vsyncpa [#allocation5], 1

</llo_original>
